<compile_context>
chip_gen: v5e
topology: v5e:2x2
jax: 0.10.0
libtpu: 0.0.40
codegen_flags: <defaults>
</compile_context>

<pallas_src>
import math

import jax
import jax.numpy as jnp
from jax.experimental import pallas as pl
from jax.experimental.pallas import tpu as pltpu

_MIN_CHUNK_BYTES = 1 << 20   # only split copies once chunks are >= 1 MiB
_MAX_CHUNKS = 8              # a handful of in-flight DMAs saturates HBM


def _pick_chunks(total_elems, itemsize):
    """Largest power-of-two chunk count (<= _MAX_CHUNKS) that evenly divides
    the flat length while keeping every chunk >= _MIN_CHUNK_BYTES."""
    c = _MAX_CHUNKS
    while c > 1:
        if total_elems % c == 0 and (total_elems // c) * itemsize >= _MIN_CHUNK_BYTES:
            return c
        c //= 2
    return 1


def _make_copy_kernel(n_chunks):
    def kernel(x_hbm, o_hbm, sems):
        # Identity: pure HBM->HBM DMA, no VMEM staging.
        copies = []
        for i in range(n_chunks):        # static unroll: n_chunks is tiny
            cp = pltpu.make_async_copy(x_hbm.at[i], o_hbm.at[i], sems.at[i])
            cp.start()
            copies.append(cp)
        for cp in copies:                # all DMAs in flight before first wait
            cp.wait()
    return kernel


def peer_regularization_forward(x):
    """Pallas implementation of PeerRegularization.forward (identity)."""
    orig_shape = x.shape
    orig_dtype = x.dtype

    total = math.prod(orig_shape)
    if total == 0:
        return x

    itemsize = jnp.dtype(orig_dtype).itemsize
    n_chunks = _pick_chunks(total, itemsize)
    chunk = total // n_chunks

    # Reshape of a contiguous buffer is metadata-only (free) at the XLA level.
    x2d = x.reshape(n_chunks, chunk)

    out2d = pl.pallas_call(
        _make_copy_kernel(n_chunks),
        out_shape=jax.ShapeDtypeStruct((n_chunks, chunk), orig_dtype),
        in_specs=[pl.BlockSpec(memory_space=pl.ANY)],
        out_specs=pl.BlockSpec(memory_space=pl.ANY),
        scratch_shapes=[pltpu.SemaphoreType.DMA((n_chunks,))],
        cost_estimate=pl.CostEstimate(
            flops=0, transcendentals=0, bytes_accessed=2 * total * itemsize),
    )(x2d)

    return out2d.reshape(orig_shape)


if __name__ == "__main__":
    key = jax.random.PRNGKey(0)
    # PeerRegularization has no parameters; any NCHW activation works.
    x = jax.random.normal(key, (2, 4, 16, 16), dtype=jnp.float32)

    y = peer_regularization_forward(x)
    y = jax.block_until_ready(y)

    assert y.shape == x.shape
    assert y.dtype == x.dtype
    assert bool(jnp.all(y == x))

    print("KERNEL_OK")
</pallas_src>

<mosaic_0001>
module attributes {stable_mosaic.version = 11 : i64} {
  func.func @kernel(%arg0: memref<1x2048xf32, #tpu.memory_space<any>>, %arg1: memref<1x2048xf32, #tpu.memory_space<any>>, %arg2: memref<1x!tpu.dma_semaphore, #tpu.memory_space<semaphore_mem>>) attributes {dimension_semantics = [], scalar_prefetch = 0 : i64, scratch_operands = 1 : i64, tpu.core_type = #tpu.core_type<tc>} {
    %c0_i32 = arith.constant 0 : i32
    %c0_i32_0 = arith.constant 0 : i32
    %c0_i32_1 = arith.constant 0 : i32
    %c0_i32_2 = arith.constant 0 : i32
    %0 = tpu.memref_slice %arg0[%c0_i32, %c0_i32_2] : memref<1x2048xf32, #tpu.memory_space<any>> -> memref<1x2048xf32, #tpu.memory_space<any>>
    %1 = tpu.memref_squeeze %0 : memref<1x2048xf32, #tpu.memory_space<any>> -> memref<2048xf32, #tpu.memory_space<any>>
    %c0_i32_3 = arith.constant 0 : i32
    %2 = tpu.memref_slice %arg1[%c0_i32_0, %c0_i32_3] : memref<1x2048xf32, #tpu.memory_space<any>> -> memref<1x2048xf32, #tpu.memory_space<any>>
    %3 = tpu.memref_squeeze %2 : memref<1x2048xf32, #tpu.memory_space<any>> -> memref<2048xf32, #tpu.memory_space<any>>
    %4 = tpu.memref_slice %arg2[%c0_i32_1] : memref<1x!tpu.dma_semaphore, #tpu.memory_space<semaphore_mem>> -> memref<1x!tpu.dma_semaphore, #tpu.memory_space<semaphore_mem>>
    %5 = tpu.memref_squeeze %4 : memref<1x!tpu.dma_semaphore, #tpu.memory_space<semaphore_mem>> -> memref<!tpu.dma_semaphore, #tpu.memory_space<semaphore_mem>>
    tpu.enqueue_dma source(%1 : memref<2048xf32, #tpu.memory_space<any>>) target(%3 : memref<2048xf32, #tpu.memory_space<any>>) target_semaphore(%5 : memref<!tpu.dma_semaphore, #tpu.memory_space<semaphore_mem>>)
    %c0_i32_4 = arith.constant 0 : i32
    %c0_i32_5 = arith.constant 0 : i32
    %c0_i32_6 = arith.constant 0 : i32
    %c0_i32_7 = arith.constant 0 : i32
    %6 = tpu.memref_slice %arg0[%c0_i32_4, %c0_i32_7] : memref<1x2048xf32, #tpu.memory_space<any>> -> memref<1x2048xf32, #tpu.memory_space<any>>
    %7 = tpu.memref_squeeze %6 : memref<1x2048xf32, #tpu.memory_space<any>> -> memref<2048xf32, #tpu.memory_space<any>>
    %c0_i32_8 = arith.constant 0 : i32
    %8 = tpu.memref_slice %arg1[%c0_i32_5, %c0_i32_8] : memref<1x2048xf32, #tpu.memory_space<any>> -> memref<1x2048xf32, #tpu.memory_space<any>>
    %9 = tpu.memref_squeeze %8 : memref<1x2048xf32, #tpu.memory_space<any>> -> memref<2048xf32, #tpu.memory_space<any>>
    %10 = tpu.memref_slice %arg2[%c0_i32_6] : memref<1x!tpu.dma_semaphore, #tpu.memory_space<semaphore_mem>> -> memref<1x!tpu.dma_semaphore, #tpu.memory_space<semaphore_mem>>
    %11 = tpu.memref_squeeze %10 : memref<1x!tpu.dma_semaphore, #tpu.memory_space<semaphore_mem>> -> memref<!tpu.dma_semaphore, #tpu.memory_space<semaphore_mem>>
    tpu.wait_dma2 semaphore(%11 : memref<!tpu.dma_semaphore, #tpu.memory_space<semaphore_mem>>) src(%7 : memref<2048xf32, #tpu.memory_space<any>>) dst(%9 : memref<2048xf32, #tpu.memory_space<any>>)
    return
  }
}

</mosaic_0001>

<llo_original>
// kernel: tpu_custom_call.1
$region0: #{tpu_custom_call.1}
  #allocation0 [shape = 'u32[]', space=smem, size = 0x4, offset = 0x4, fixed_abs, tag = 'smem constant byte address 0x4 - core index']
  #allocation1 [shape = 'u32[72,128]{1,0:T(1,128)}', space=vmem, size = 0x9000, scoped, tag = 'internal scratch']
  #allocation2 [shape = 's32[1]{0}', space=sflag, size = 0x4, scoped, tag = 'scratch operand']
  #allocation3 [shape = 's32[]', space=sflag, size = 0x4, offset = 0, fixed_abs, tag = 'sflag constant byte address 0x0 - dummy sync flag']
  #allocation4 [shape = 'u32[0]{0}', space=smem, size = 0, offset = 0, fixed_abs, tag = 'smem constant byte address 0x0 - null']
  %s0 = inlined_call_operand.hbm [shape: f32[1,2048], index: 0, kind: input, shape index: {}]
  %s1 = inlined_call_operand.hbm [shape: f32[1,2048], index: 1, kind: output, shape index: {}]
  %s2 = sld [smem:[#allocation0]]
  $region2: #{tpu_custom_call.1} parent=0
    _
  %s4 = ssub.s32 1, %s2
  %s5 = scalar_select 0, %s4, %s2
  %s7 = sshll.u32 1, 14
  %s8 = sxor.u32 4294967295, %s7
  %s10 = sshll.u32 %s0, 4
  %s11 = int_to_ptr.hbm [resolvable:$true] %s10
  %s12 = sshll.u32 %s1, 4
  %s13 = int_to_ptr.hbm [resolvable:$true] %s12
  %16 = dma.general %s11, 256, %s13, [#allocation2], [#allocation3], [#allocation4], 0, 0
  %18 = dma.done [#allocation2], 256
  %19 = vsyncmov [#allocation2]
  %s20 = vpop.sfrf %19
  %p21 = scmp.eq.s32.totalorder %s20, 0
  %p22 = pneg %p21
  %24 = shalt.err (%p22)

</llo_original>
